<compile_context>
chip_gen: v7x
topology: tpu7x:2x2x1
jax: 0.10.0
libtpu: 0.0.40
codegen_flags: <defaults>
</compile_context>

<pallas_src>
import functools

import jax
import jax.numpy as jnp
from jax import lax
from jax.experimental import pallas as pl
from jax.experimental.pallas import tpu as pltpu

f32 = jnp.float32
bf16 = jnp.bfloat16


def _round_up(x, m):
    return ((x + m - 1) // m) * m


def _tpu_vmem_capacity():
    """Per-core VMEM bytes; conservative (v7x) fallback if the query fails."""
    try:
        return int(pltpu.get_tpu_info().vmem_capacity_bytes)
    except Exception:
        return 64 << 20


def _is_v7x():
    try:
        kind = jax.devices()[0].device_kind.lower()
        return ("v7" in kind) or ("tpu7" in kind)
    except Exception:
        return False


@functools.lru_cache(maxsize=None)
def _single_buffer_supported():
    """Probe whether pipeline_mode=pl.Buffered(1) lowers on this install."""
    try:
        def k(x_ref, o_ref):
            o_ref[...] = x_ref[...]
        x = jnp.zeros((8, 128), jnp.float32)
        out = pl.pallas_call(
            k,
            grid=(1,),
            in_specs=[pl.BlockSpec((8, 128), lambda i: (0, 0),
                                   pipeline_mode=pl.Buffered(1))],
            out_specs=pl.BlockSpec((8, 128), lambda i: (0, 0)),
            out_shape=jax.ShapeDtypeStruct((8, 128), jnp.float32),
        )(x)
        jax.block_until_ready(out)
        return True
    except Exception:
        return False


def _inv_spec(shape, index_map):
    """BlockSpec for a grid-invariant operand; single-buffered if supported."""
    if _single_buffer_supported():
        return pl.BlockSpec(shape, index_map, pipeline_mode=pl.Buffered(1))
    return pl.BlockSpec(shape, index_map)


def _pick_row_tile(m, cap):
    """Row tile for the flattened (batch*time) axis.

    Prefers a tile that divides m exactly (no padding, no wrapper slicing);
    falls back to padding only if m has no multiple-of-8 divisor <= cap."""
    cap = max(8, cap)
    if m <= cap:
        return m, m
    best = 0
    d = 8
    while d <= cap:
        if m % d == 0:
            best = d
        d += 8
    if best:
        return best, m
    t = min(cap, 256)
    return t, _round_up(m, t)


def _pick_time_block(t, cap):
    """Largest divisor of t that is <= cap (>= 1)."""
    best = 1
    for d in range(1, max(1, min(t, cap)) + 1):
        if t % d == 0:
            best = d
    return best


# ---------------------------------------------------------------------------
# Kernel 1: batched layer-0 x-projection over the whole sequence.
#   x [TM, Ep] bf16 @ wx0 [Ep, 3Hp] bf16 + b0 [1, 3Hp] f32 -> xp0 [TM, 3Hp] bf16
# ---------------------------------------------------------------------------
def _matmul_bias_kernel(x_ref, w_ref, b_ref, o_ref):
    o_ref[...] = (
        jnp.dot(x_ref[...], w_ref[...], preferred_element_type=jnp.float32)
        + b_ref[...]
    ).astype(o_ref.dtype)


# ---------------------------------------------------------------------------
# Kernel 2: GRU recurrence, grid = (batch_chunks, time_blocks).
#   Each grid step runs TB consecutive timesteps of the full stack; hidden
#   state is carried in a VMEM scratch, re-initialised at the first time block.
# ---------------------------------------------------------------------------
def _gru_recurrent_kernel(num_layers, hp, tb, *refs):
    n_in = 3 * num_layers - 1
    xp0_ref = refs[0]                                   # [TB, Bc, 3*hp] bf16
    wh_refs = refs[1:1 + num_layers]                    # [hp, 3*hp] bf16
    wx_refs = refs[1 + num_layers:2 * num_layers]       # layers 1..L-1
    b_refs = refs[2 * num_layers:n_in]                  # layers 1..L-1
    hid_ref = refs[n_in]                                # [TB, Bc, hp] bf16
    h_scr = refs[n_in + 1]                              # [L, Bc, hp] f32 scratch

    @pl.when(pl.program_id(1) == 0)
    def _init():
        h_scr[...] = jnp.zeros_like(h_scr)

    # Statically unrolled time block (tb is small; all carried state lives in
    # refs, so this is equivalent to lax.fori_loop(..., unroll=True)).
    for s in range(tb):
        xp = xp0_ref[s].astype(jnp.float32)             # [Bc, 3*hp]
        hidden = None
        for l in range(num_layers):
            if l > 0:
                xp = (jnp.dot(hidden.astype(jnp.bfloat16), wx_refs[l - 1][...],
                              preferred_element_type=jnp.float32)
                      + b_refs[l - 1][...])
            h_prev = h_scr[l]                           # [Bc, hp] f32
            hh = jnp.dot(h_prev.astype(jnp.bfloat16), wh_refs[l][...],
                         preferred_element_type=jnp.float32)
            r = jax.nn.sigmoid(xp[:, :hp] + hh[:, :hp])
            z = jax.nn.sigmoid(xp[:, hp:2 * hp] + hh[:, hp:2 * hp])
            n = jnp.tanh(xp[:, 2 * hp:] + r * hh[:, 2 * hp:])
            h_new = (1.0 - z) * n + z * h_prev
            h_scr[l] = h_new
            hidden = h_new
        hid_ref[s] = hidden.astype(hid_ref.dtype)


# ---------------------------------------------------------------------------
# Kernel 3: vocab-tiled output projection + masked NLL (online logsumexp).
#   grid = (row tiles "parallel", vocab tiles "arbitrary").
#   hid [TM, Hp] bf16 @ wo [Hp, TN] bf16 + bo [1, TN] f32 -> logits tile;
#   running max / sum-exp / picked-logit in VMEM scratch; ce written at last j.
# ---------------------------------------------------------------------------
def _proj_loss_kernel(tn, hid_ref, tgt_ref, wo_ref, bo_ref,
                      logits_ref, ce_ref, m_scr, s_scr, p_scr):
    j = pl.program_id(1)

    @pl.when(j == 0)
    def _init():
        m_scr[...] = jnp.full_like(m_scr, -jnp.inf)
        s_scr[...] = jnp.zeros_like(s_scr)
        p_scr[...] = jnp.zeros_like(p_scr)

    logits = (jnp.dot(hid_ref[...], wo_ref[...],
                      preferred_element_type=jnp.float32) + bo_ref[...])
    logits_ref[...] = logits.astype(logits_ref.dtype)

    gt = tgt_ref[...]                                   # [TM, 1] int32
    col = j * tn + lax.broadcasted_iota(jnp.int32, logits.shape, 1)
    p_scr[...] += jnp.sum(jnp.where(col == gt, logits, 0.0),
                          axis=1, keepdims=True)

    m_prev = m_scr[...]
    m_new = jnp.maximum(m_prev, jnp.max(logits, axis=1, keepdims=True))
    s_scr[...] = (s_scr[...] * jnp.exp(m_prev - m_new)
                  + jnp.sum(jnp.exp(logits - m_new), axis=1, keepdims=True))
    m_scr[...] = m_new

    @pl.when(j == pl.num_programs(1) - 1)
    def _fin():
        lse = m_scr[...] + jnp.log(s_scr[...])
        ce_ref[...] = jnp.where(gt != 0, lse - p_scr[...], 0.0)


# ---------------------------------------------------------------------------
# Wrapper
# ---------------------------------------------------------------------------
def rnn_forward(sent, length, params, *, num_layers, num_units, num_vocabs):
    """Returns (loss, logits[B, T-1, V]) — same semantics as RNN.forward.
    Logits are returned in bf16 (values identical up to bf16 rounding)."""
    wordvec = params["wordvec"]                          # [V, E]
    B, T = sent.shape
    V, E, H, L = num_vocabs, wordvec.shape[1], num_units, num_layers

    Hp = _round_up(H, 128)                               # lane-dense dims
    Ep = _round_up(E, 128)
    Vp = _round_up(V, 128)
    G3 = 3 * Hp
    M = (T - 1) * B                                      # flattened rows

    # ---- generation-aware VMEM budget / tile selection ---------------------
    vmem_cap = _tpu_vmem_capacity()                      # 64 MiB v7x, 128 MiB v5e/v6e
    vmem_limit = int(max(32 << 20, min(vmem_cap - (16 << 20), 112 << 20)))
    budget = int(vmem_limit * 0.6)                       # sizing budget w/ headroom

    # vocab tile: multiple-of-128 divisor of Vp, <= 1024, wo double-buffer
    # capped at ~1/3 of the budget.
    kv = Vp // 128
    TN = 128
    for cand in range(2, 9):
        if kv % cand == 0 and Hp * (128 * cand) * 2 * 2 <= budget // 3:
            TN = 128 * cand

    # row tile: bounded by both kernel-1 and kernel-3 per-step footprints.
    per_row3 = 2 * Hp * 2 + 2 * TN * 2 + 64              # hid + logits (dbuf bf16)
    fixed3 = Hp * TN * 2 * 2 + TN * 4 * 2                # wo + bo tiles
    per_row1 = 2 * Ep * 2 + 2 * G3 * 2                   # emb + xp0 (dbuf bf16)
    fixed1 = Ep * G3 * 2 + G3 * 4                        # wx0 + b0 (single buf)
    row_cap = min(512,
                  max(8, (budget - fixed3) // per_row3),
                  max(8, (budget - fixed1) // per_row1))
    TMr, Mp = _pick_row_tile(M, row_cap)

    # megacore batch split: only on v7x and only when each half still fills
    # the 256-row MXU.
    NB = 2 if (_is_v7x() and B % 16 == 0 and B // 2 >= 256) else 1
    Bc = B // NB

    # time block for the recurrence (divides T-1; bounded by kernel-2 VMEM).
    w2_bytes = (2 * L - 1) * Hp * G3 * 2 + (L - 1) * G3 * 4
    scr2_bytes = L * Bc * Hp * 4
    tmp2_bytes = 6 * Bc * G3 * 4
    per_tb = Bc * (G3 + Hp) * 2 * 2
    tb_cap = max(1, (budget - w2_bytes - scr2_bytes - tmp2_bytes) // per_tb)
    TB = _pick_time_block(T - 1, min(8, tb_cap))
    NT = (T - 1) // TB

    # ---- gate-fused, lane-padded, bf16 matmul operands ----------------------
    def fuse_w(w3, in_pad):                              # [3, in, H] -> [in_pad, 3*Hp]
        parts = [jnp.pad(w3[g].astype(f32),
                         ((0, in_pad - w3.shape[1]), (0, Hp - H)))
                 for g in range(3)]
        return jnp.concatenate(parts, axis=1).astype(bf16)

    def fuse_b(b3):                                      # [3, 1, H] -> [1, 3*Hp] f32
        parts = [jnp.pad(b3[g].astype(f32), ((0, 0), (0, Hp - H)))
                 for g in range(3)]
        return jnp.concatenate(parts, axis=1)

    wx0 = fuse_w(params["wx"][0], Ep)                    # [Ep, 3Hp] bf16
    b0 = fuse_b(params["b"][0])                          # [1, 3Hp] f32
    whs = [fuse_w(params["wh"][l], Hp) for l in range(L)]
    wxs = [fuse_w(params["wx"][l], Hp) for l in range(1, L)]
    bs = [fuse_b(params["b"][l]) for l in range(1, L)]
    wo = jnp.pad(params["wo"].astype(f32), ((0, Hp - H), (0, Vp - V))).astype(bf16)
    bo = jnp.pad(params["bo"].astype(f32), ((0, 0), (0, Vp - V)),
                 constant_values=-1e30)                  # padded vocab cols ~ -inf

    # ---- embedding lookup: bf16 table, gathered directly time-major --------
    wv_pad = jnp.pad(wordvec.astype(f32), ((0, 0), (0, Ep - E))).astype(bf16)
    ids_tm = jnp.transpose(sent[:, :T - 1], (1, 0))      # tiny int transpose
    emb_flat = jnp.take(wv_pad, ids_tm, axis=0).reshape(M, Ep)   # [M, Ep] bf16
    if Mp != M:
        emb_flat = jnp.pad(emb_flat, ((0, Mp - M), (0, 0)))

    # ---- kernel 1: batched layer-0 x-projection -----------------------------
    xp0_flat = pl.pallas_call(
        _matmul_bias_kernel,
        grid=(Mp // TMr,),
        in_specs=[pl.BlockSpec((TMr, Ep), lambda i: (i, 0)),
                  _inv_spec((Ep, G3), lambda i: (0, 0)),
                  _inv_spec((1, G3), lambda i: (0, 0))],
        out_specs=pl.BlockSpec((TMr, G3), lambda i: (i, 0)),
        out_shape=jax.ShapeDtypeStruct((Mp, G3), bf16),
        compiler_params=pltpu.CompilerParams(
            dimension_semantics=("parallel",),
            vmem_limit_bytes=vmem_limit),
    )(emb_flat, wx0, b0)
    if Mp != M:
        xp0_flat = xp0_flat[:M]
    xp0 = xp0_flat.reshape(T - 1, B, G3)                 # free reshape (time-major)

    # ---- kernel 2: sequential GRU recurrence, TB timesteps per grid step ----
    rec_kernel = functools.partial(_gru_recurrent_kernel, L, Hp, TB)
    rec_in_specs = ([pl.BlockSpec((TB, Bc, G3), lambda nb, tt: (tt, nb, 0))]
                    + [_inv_spec((Hp, G3), lambda nb, tt: (0, 0)) for _ in range(L)]
                    + [_inv_spec((Hp, G3), lambda nb, tt: (0, 0)) for _ in range(L - 1)]
                    + [_inv_spec((1, G3), lambda nb, tt: (0, 0)) for _ in range(L - 1)])
    hid = pl.pallas_call(
        rec_kernel,
        grid=(NB, NT),
        in_specs=rec_in_specs,
        out_specs=pl.BlockSpec((TB, Bc, Hp), lambda nb, tt: (tt, nb, 0)),
        out_shape=jax.ShapeDtypeStruct((T - 1, B, Hp), bf16),
        scratch_shapes=[pltpu.VMEM((L, Bc, Hp), f32)],
        compiler_params=pltpu.CompilerParams(
            dimension_semantics=("parallel", "arbitrary"),
            vmem_limit_bytes=vmem_limit),
    )(xp0, *whs, *wxs, *bs)

    # ---- kernel 3: vocab-tiled output projection + masked NLL ---------------
    # Transpose the (small) hidden tensor to batch-major so the (large) logits
    # are written directly in their final [B, T-1, Vp] layout.
    hid_bm = jnp.transpose(hid, (1, 0, 2)).reshape(M, Hp)
    tgt = sent[:, 1:].astype(jnp.int32).reshape(M, 1)
    if Mp != M:
        hid_bm = jnp.pad(hid_bm, ((0, Mp - M), (0, 0)))
        tgt = jnp.pad(tgt, ((0, Mp - M), (0, 0)))        # pad target 0 -> masked

    proj_kernel = functools.partial(_proj_loss_kernel, TN)
    logits_flat, ce = pl.pallas_call(
        proj_kernel,
        grid=(Mp // TMr, Vp // TN),
        in_specs=[pl.BlockSpec((TMr, Hp), lambda i, j: (i, 0)),
                  pl.BlockSpec((TMr, 1), lambda i, j: (i, 0)),
                  pl.BlockSpec((Hp, TN), lambda i, j: (0, j)),
                  pl.BlockSpec((1, TN), lambda i, j: (0, j))],
        out_specs=(pl.BlockSpec((TMr, TN), lambda i, j: (i, j)),
                   pl.BlockSpec((TMr, 1), lambda i, j: (i, 0))),
        out_shape=(jax.ShapeDtypeStruct((Mp, Vp), bf16),
                   jax.ShapeDtypeStruct((Mp, 1), f32)),
        scratch_shapes=[pltpu.VMEM((TMr, 1), f32) for _ in range(3)],
        compiler_params=pltpu.CompilerParams(
            dimension_semantics=("parallel", "arbitrary"),
            vmem_limit_bytes=vmem_limit),
    )(hid_bm, tgt, wo, bo)

    if Mp != M:
        logits_flat = logits_flat[:M]
        ce = ce[:M]
    loss = jnp.sum(ce) / jnp.sum(length).astype(f32)
    logits = logits_flat.reshape(B, T - 1, Vp)
    if Vp != V:
        logits = logits[:, :, :V]
    return loss, logits


def rnn_forward_ref(sent, length, params, *, num_layers, num_units, num_vocabs):
    """Pure-JAX f32 reference with identical semantics (for verification)."""
    wordvec = params["wordvec"]
    B, T = sent.shape
    emb = jnp.take(wordvec, sent, axis=0).astype(jnp.float32)   # [B, T, E]
    h = [jnp.zeros((B, num_units), jnp.float32) for _ in range(num_layers)]
    loss = jnp.float32(0.0)
    logits_list = []
    for i in range(T - 1):
        hidden = emb[:, i]
        for l in range(num_layers):
            wx, wh, b = params["wx"][l], params["wh"][l], params["b"][l]
            r = jax.nn.sigmoid(hidden @ wx[0] + h[l] @ wh[0] + b[0])
            z = jax.nn.sigmoid(hidden @ wx[1] + h[l] @ wh[1] + b[1])
            n = jnp.tanh(hidden @ wx[2] + r * (h[l] @ wh[2]) + b[2])
            h[l] = (1.0 - z) * n + z * h[l]
            hidden = h[l]
        logits = hidden @ params["wo"] + params["bo"]
        logits_list.append(logits)
        gt = sent[:, i + 1]
        logp = jax.nn.log_softmax(logits, axis=1)
        ce = -jnp.take_along_axis(logp, gt[:, None], axis=1)
        loss = loss + jnp.sum(jnp.where(gt[:, None] != 0, ce, 0.0))
    loss = loss / jnp.sum(length).astype(jnp.float32)
    return loss, jnp.stack(logits_list, axis=1)


if __name__ == "__main__":
    # Small, forward-consistent shapes
    B, T = 8, 8            # batch, sequence length
    V, E, H = 128, 32, 32  # num_vocabs, num_embed_units, num_units
    L = 2                  # num_layers

    key = jax.random.PRNGKey(0)
    k_wv, k_wx, k_wh, k_b, k_wo, k_bo, k_sent, k_len = jax.random.split(key, 8)

    params = {
        "wordvec": 0.1 * jax.random.normal(k_wv, (V, E), jnp.float32),
        "wx": [0.1 * jax.random.normal(jax.random.fold_in(k_wx, l),
                                       (3, E if l == 0 else H, H), jnp.float32)
               for l in range(L)],
        "wh": [0.1 * jax.random.normal(jax.random.fold_in(k_wh, l),
                                       (3, H, H), jnp.float32)
               for l in range(L)],
        "b": [0.1 * jax.random.normal(jax.random.fold_in(k_b, l),
                                      (3, 1, H), jnp.float32)
              for l in range(L)],
        "wo": 0.1 * jax.random.normal(k_wo, (H, V), jnp.float32),
        "bo": 0.1 * jax.random.normal(k_bo, (1, V), jnp.float32),
    }

    # Deterministic "batched_data": tokens in [1, V), zero-padded by length
    sent = jax.random.randint(k_sent, (B, T), 1, V, dtype=jnp.int32)
    lengths = jax.random.randint(k_len, (B,), 3, T + 1, dtype=jnp.int32)
    valid = (jnp.arange(T)[None, :] < lengths[:, None]).astype(jnp.int32)
    sent = sent * valid

    loss, logits = rnn_forward(sent, lengths, params,
                               num_layers=L, num_units=H, num_vocabs=V)
    loss, logits = jax.block_until_ready((loss, logits))

    loss_ref, logits_ref = rnn_forward_ref(sent, lengths, params,
                                           num_layers=L, num_units=H,
                                           num_vocabs=V)
    assert logits.shape == (B, T - 1, V)
    # Tolerance accounts for bf16 matmul operands / bf16-stored intermediates
    # (all accumulation and gate/softmax math is f32 in-kernel).
    assert jnp.allclose(logits.astype(jnp.float32), logits_ref,
                        atol=3e-2, rtol=3e-2)
    assert jnp.allclose(loss, loss_ref, atol=2e-2, rtol=2e-2)

    print("KERNEL_OK")
</pallas_src>

<mosaic_0001>
module attributes {stable_mosaic.version = 11 : i64} {
  func.func @k(%arg0: i32, %arg1: memref<8x128xf32, #tpu.memory_space<vmem>>, %arg2: memref<8x128xf32, #tpu.memory_space<vmem>>) attributes {dimension_semantics = [#tpu.dimension_semantics<arbitrary>], iteration_bounds = array<i64: 1>, scalar_prefetch = 0 : i64, scratch_operands = 0 : i64, tpu.core_type = #tpu.core_type<tc>, window_params = [{pipeline_mode = #tpu.pipeline_mode<synchronous>, transform_indices = @transform_0, window_bounds = array<i64: 8, 128>}, {pipeline_mode = #tpu.pipeline_mode<synchronous>, transform_indices = @transform_1, window_bounds = array<i64: 8, 128>}]} {
    %c0 = arith.constant 0 : index
    %c0_0 = arith.constant 0 : index
    %0 = vector.load %arg1[%c0, %c0_0] : memref<8x128xf32, #tpu.memory_space<vmem>>, vector<8x128xf32>
    %c0_1 = arith.constant 0 : index
    %c0_2 = arith.constant 0 : index
    %1 = vector.load %arg2[%c0_1, %c0_2] : memref<8x128xf32, #tpu.memory_space<vmem>>, vector<8x128xf32>
    tpu.vector_store %arg2[%c0_1, %c0_2], %0 {strides = array<i32>} : memref<8x128xf32, #tpu.memory_space<vmem>>, vector<8x128xf32>,
    return
  }
  func.func @transform_0(%arg0: i32) -> (i32, i32) {
    %c0_i32 = arith.constant 0 : i32
    %c0_i32_0 = arith.constant 0 : i32
    %c0_i32_1 = arith.constant 0 : i32
    return %c0_i32, %c0_i32_0 : i32, i32
  }
  func.func @transform_1(%arg0: i32) -> (i32, i32) {
    %c0_i32 = arith.constant 0 : i32
    %c0_i32_0 = arith.constant 0 : i32
    %c0_i32_1 = arith.constant 0 : i32
    return %c0_i32, %c0_i32_0 : i32, i32
  }
}

module attributes {stable_mosaic.version = 11 : i64} {
  func.func @_matmul_bias_kernel(%arg0: i32, %arg1: memref<56x128xbf16, #tpu.memory_space<vmem>>, %arg2: memref<128x384xbf16, #tpu.memory_space<vmem>>, %arg3: memref<1x384xf32, #tpu.memory_space<vmem>>, %arg4: memref<56x384xbf16, #tpu.memory_space<vmem>>) attributes {dimension_semantics = [#tpu.dimension_semantics<parallel>], iteration_bounds = array<i64: 1>, scalar_prefetch = 0 : i64, scratch_operands = 0 : i64, tpu.core_type = #tpu.core_type<tc>, window_params = [{transform_indices = @transform_0, window_bounds = array<i64: 56, 128>}, {pipeline_mode = #tpu.pipeline_mode<synchronous>, transform_indices = @transform_1, window_bounds = array<i64: 128, 384>}, {pipeline_mode = #tpu.pipeline_mode<synchronous>, transform_indices = @transform_2, window_bounds = array<i64: 1, 384>}, {transform_indices = @transform_3, window_bounds = array<i64: 56, 384>}]} {
    %c0 = arith.constant 0 : index
    %c0_0 = arith.constant 0 : index
    %0 = vector.load %arg1[%c0, %c0_0] : memref<56x128xbf16, #tpu.memory_space<vmem>>, vector<56x128xbf16>
    %c0_1 = arith.constant 0 : index
    %c0_2 = arith.constant 0 : index
    %1 = vector.load %arg2[%c0_1, %c0_2] : memref<128x384xbf16, #tpu.memory_space<vmem>>, vector<128x384xbf16>
    %cst = arith.constant dense<0.000000e+00> : vector<56x384xf32>
    %2 = tpu.matmul %0, %1, %cst {dimension_numbers = #tpu.dot_dimension_numbers<[1], [0], [0], [1], [0, 0, 1, 1], [], []>} : vector<56x128xbf16>, vector<128x384xbf16>, vector<56x384xf32> -> vector<56x384xf32>
    %c0_3 = arith.constant 0 : index
    %c0_4 = arith.constant 0 : index
    %3 = vector.load %arg3[%c0_3, %c0_4] : memref<1x384xf32, #tpu.memory_space<vmem>>, vector<1x384xf32>
    %4 = vector.broadcast %3 : vector<1x384xf32> to vector<56x384xf32>
    %5 = arith.addf %2, %4 : vector<56x384xf32>
    %6 = arith.truncf %5 : vector<56x384xf32> to vector<56x384xbf16>
    %c0_5 = arith.constant 0 : index
    %c0_6 = arith.constant 0 : index
    %7 = vector.load %arg4[%c0_5, %c0_6] : memref<56x384xbf16, #tpu.memory_space<vmem>>, vector<56x384xbf16>
    tpu.vector_store %arg4[%c0_5, %c0_6], %6 {strides = array<i32>} : memref<56x384xbf16, #tpu.memory_space<vmem>>, vector<56x384xbf16>,
    return
  }
  func.func @transform_0(%arg0: i32) -> (i32, i32) {
    %c0_i32 = arith.constant 0 : i32
    %c0_i32_0 = arith.constant 0 : i32
    return %arg0, %c0_i32 : i32, i32
  }
  func.func @transform_1(%arg0: i32) -> (i32, i32) {
    %c0_i32 = arith.constant 0 : i32
    %c0_i32_0 = arith.constant 0 : i32
    %c0_i32_1 = arith.constant 0 : i32
    return %c0_i32, %c0_i32_0 : i32, i32
  }
  func.func @transform_2(%arg0: i32) -> (i32, i32) {
    %c0_i32 = arith.constant 0 : i32
    %c0_i32_0 = arith.constant 0 : i32
    %c0_i32_1 = arith.constant 0 : i32
    return %c0_i32, %c0_i32_0 : i32, i32
  }
  func.func @transform_3(%arg0: i32) -> (i32, i32) {
    %c0_i32 = arith.constant 0 : i32
    %c0_i32_0 = arith.constant 0 : i32
    return %arg0, %c0_i32 : i32, i32
  }
}

</mosaic_0001>

<llo_original>
// kernel: tpu_custom_call.1
$region0: #{tpu_custom_call.1}
  #allocation0 [shape = 'u32[]', space=smem, size = 0x4, offset = 0x4, fixed_abs, tag = 'smem constant byte address 0x4 - core index']
  #allocation1 [shape = 'u32[144,128]{1,0:T(1,128)}', space=vmem, size = 0x12000, scoped, tag = 'internal scratch']
  %s0 = inlined_call_operand.hbm [shape: f32[8,128], index: 0, kind: input, shape index: {}]
  %s1 = inlined_call_operand.hbm [shape: f32[8,128], index: 1, kind: output, shape index: {}]
  %s2 = sld [smem:[#allocation0]]
  $region18: #{tpu_custom_call.1} parent=0
    _
  %s4 = ssub.s32 1, %s2
  %s5 = scalar_select 0, %s4, %s2
  $region1: #{tpu_custom_call.1} parent=0
    #allocation2 [shape = 'u8[4096]{0}', space=vmem, size = 0x1000, scoped, tag = 'input window, operand 0, single buffered']
    #allocation3 [shape = 's32[1]{0}', space=sflag, size = 0x4, scoped, tag = 'scoped memory for tpu_custom_call.1']
    #allocation4 [shape = 's32[1]{0}', space=sflag, size = 0x4, scoped, tag = 'scoped memory for tpu_custom_call.1']
    #allocation5 [shape = 'u8[4096]{0}', space=vmem, size = 0x1000, scoped, tag = 'output window, operand 0, single buffered']
    %6 = vsyncpa [#allocation3], 0
    %7 = vsyncpa [#allocation4], 0
    // Predicated region
    $region2: #{tpu_custom_call.1} parent=1 // pred_check
      _
    $region3: #{tpu_custom_call.1} parent=1 // pred_check_branch
      %9 = sbr.rel (0) target = $region5
    $region4: #{tpu_custom_call.1} parent=1 // pred_region
      %s11 = ssub.s32 128, 128
      %12 = vsyncadd [#allocation3], %s11
      %s14 = sshll.u32 [#allocation2], 4
      %s15 = int_to_ptr.vmem [resolvable:$true] %s14
      %17 = dma.hbm_to_vmem [thread:$0]  %s0, 128, %s15, [#allocation3]
    $region5: #{tpu_custom_call.1} parent=1 // pred_fallthru
      _
    // Predicated region
    $region6: #{tpu_custom_call.1} parent=1 // pred_check
      _
    $region7: #{tpu_custom_call.1} parent=1 // pred_check_branch
      %19 = sbr.rel (0) target = $region9
    $region8: #{tpu_custom_call.1} parent=1 // pred_region
      %20 = dma.done [#allocation3], 128
    $region9: #{tpu_custom_call.1} parent=1 // pred_fallthru
      _
    %v21 = vld [vmem:[#allocation2] sm:$0xff]
    %22 = vst [vmem:[#allocation5] sm:$0xff] %v21
    // Predicated region
    $region10: #{tpu_custom_call.1} parent=1 // pred_check
      _
    $region11: #{tpu_custom_call.1} parent=1 // pred_check_branch
      %24 = sbr.rel (0) target = $region13
    $region12: #{tpu_custom_call.1} parent=1 // pred_region
      %s26 = ssub.s32 128, 128
      %27 = vsyncadd [#allocation4], %s26
      %s29 = sshll.u32 [#allocation5], 4
      %s30 = int_to_ptr.vmem [resolvable:$true] %s29
      %32 = dma.vmem_to_hbm [thread:$0]  %s30, 128, %s1, [#allocation4]
    $region13: #{tpu_custom_call.1} parent=1 // pred_fallthru
      _
    // Predicated region
    $region14: #{tpu_custom_call.1} parent=1 // pred_check
      _
    $region15: #{tpu_custom_call.1} parent=1 // pred_check_branch
      %34 = sbr.rel (0) target = $region17
    $region16: #{tpu_custom_call.1} parent=1 // pred_region
      %35 = dma.done [#allocation4], 128
    $region17: #{tpu_custom_call.1} parent=1 // pred_fallthru
      _
    %36 = vsyncpa [#allocation3], 1
    %37 = vsyncpa [#allocation4], 1

// kernel: tpu_custom_call.1
$region0: #{tpu_custom_call.1}
  #allocation0 [shape = 'u32[]', space=smem, size = 0x4, offset = 0x4, fixed_abs, tag = 'smem constant byte address 0x4 - core index']
  #allocation1 [shape = 'u32[144,128]{1,0:T(1,128)}', space=vmem, size = 0x12000, scoped, tag = 'internal scratch']
  %s0 = inlined_call_operand.hbm [shape: bf16[56,128], index: 0, kind: input, shape index: {}]
  %s1 = inlined_call_operand.hbm [shape: bf16[128,384], index: 1, kind: input, shape index: {}]
  %s2 = inlined_call_operand.vmem [shape: f32[1,384], index: 2, kind: input, shape index: {}]
  %s3 = inlined_call_operand.hbm [shape: bf16[56,384], index: 3, kind: output, shape index: {}]
  %s4 = sld [smem:[#allocation0]]
  $region30: #{tpu_custom_call.1} parent=0
    _
  %s6 = ssub.s32 1, %s4
  %s7 = scalar_select 0, %s6, %s4
  $region1: #{tpu_custom_call.1} parent=0
    #allocation2 [shape = 'u8[14336]{0}', space=vmem, size = 0x3800, scoped, tag = 'input window, operand 0, single buffered']
    #allocation3 [shape = 's32[1]{0}', space=sflag, size = 0x4, scoped, tag = 'scoped memory for tpu_custom_call.1']
    #allocation4 [shape = 's32[1]{0}', space=sflag, size = 0x4, scoped, tag = 'scoped memory for tpu_custom_call.1']
    #allocation5 [shape = 'u8[98304]{0}', space=vmem, size = 0x18000, scoped, tag = 'input window, operand 1, single buffered']
    #allocation6 [shape = 's32[1]{0}', space=sflag, size = 0x4, scoped, tag = 'scoped memory for tpu_custom_call.1']
    #allocation7 [shape = 'u8[43008]{0}', space=vmem, size = 0xa800, scoped, tag = 'output window, operand 0, single buffered']
    %8 = vsyncpa [#allocation3], 0
    %9 = vsyncpa [#allocation6], 0
    %10 = vsyncpa [#allocation4], 0
    // Predicated region
    $region2: #{tpu_custom_call.1} parent=1 // pred_check
      _
    $region3: #{tpu_custom_call.1} parent=1 // pred_check_branch
      %12 = sbr.rel (0) target = $region5
    $region4: #{tpu_custom_call.1} parent=1 // pred_region
      %s14 = ssub.s32 448, 448
      %15 = vsyncadd [#allocation3], %s14
      %s16 = sshll.u32 [#allocation2], 4
      %s17 = int_to_ptr.vmem [resolvable:$true] %s16
      %22 = dma.hbm_to_vmem [thread:$0]  %s0, 448, %s17, [#allocation3], 64, 64, 4
    $region5: #{tpu_custom_call.1} parent=1 // pred_fallthru
      _
    // Predicated region
    $region6: #{tpu_custom_call.1} parent=1 // pred_check
      _
    $region7: #{tpu_custom_call.1} parent=1 // pred_check_branch
      %24 = sbr.rel (0) target = $region9
    $region8: #{tpu_custom_call.1} parent=1 // pred_region
      %s26 = ssub.s32 3072, 3072
      %27 = vsyncadd [#allocation6], %s26
      %s28 = sshll.u32 [#allocation5], 4
      %s29 = int_to_ptr.vmem [resolvable:$true] %s28
      %34 = dma.hbm_to_vmem [thread:$0]  %s1, 3072, %s29, [#allocation6], 192, 192, 12
    $region9: #{tpu_custom_call.1} parent=1 // pred_fallthru
      _
    // Predicated region
    $region10: #{tpu_custom_call.1} parent=1 // pred_check
      _
    $region11: #{tpu_custom_call.1} parent=1 // pred_check_branch
      %36 = sbr.rel (0) target = $region13
    $region12: #{tpu_custom_call.1} parent=1 // pred_region
      _
    $region13: #{tpu_custom_call.1} parent=1 // pred_fallthru
      _
    // Predicated region
    $region14: #{tpu_custom_call.1} parent=1 // pred_check
      _
    $region15: #{tpu_custom_call.1} parent=1 // pred_check_branch
      %38 = sbr.rel (0) target = $region17
    $region16: #{tpu_custom_call.1} parent=1 // pred_region
      %39 = dma.done [#allocation3], 448
    $region17: #{tpu_custom_call.1} parent=1 // pred_fallthru
      _
    // Predicated region
    $region18: #{tpu_custom_call.1} parent=1 // pred_check
      _
    $region19: #{tpu_custom_call.1} parent=1 // pred_check_branch
      %41 = sbr.rel (0) target = $region21
    $region20: #{tpu_custom_call.1} parent=1 // pred_region
      %42 = dma.done [#allocation6], 3072
    $region21: #{tpu_custom_call.1} parent=1 // pred_fallthru
      _
    %v44 = vld [vmem:[#allocation2] sm:$0xf]
    %v45 = vld [vmem:[#allocation2 + $0x4] sm:$0xf]
    %v46 = vld [vmem:[#allocation2 + $0x8] sm:$0xf]
    %v47 = vld [vmem:[#allocation2 + $0xc] sm:$0xf]
    %v48 = vld [vmem:[#allocation2 + $0x10] sm:$0xf]
    %v49 = vld [vmem:[#allocation2 + $0x14] sm:$0xf]
    %v50 = vld [vmem:[#allocation2 + $0x18] sm:$0xf]
    %v51 = vld [vmem:[#allocation5] sm:$0xff]
    %v52 = vld [vmem:[#allocation5 + $0x8] sm:$0xf]
    %v53 = vld [vmem:[#allocation5 + $0xc] sm:$0xff]
    %v54 = vld [vmem:[#allocation5 + $0x14] sm:$0xf]
    %v55 = vld [vmem:[#allocation5 + $0x18] sm:$0xff]
    %v56 = vld [vmem:[#allocation5 + $0x20] sm:$0xf]
    %v57 = vld [vmem:[#allocation5 + $0x24] sm:$0xff]
    %v58 = vld [vmem:[#allocation5 + $0x2c] sm:$0xf]
    %v59 = vld [vmem:[#allocation5 + $0x30] sm:$0xff]
    %v60 = vld [vmem:[#allocation5 + $0x38] sm:$0xf]
    %v61 = vld [vmem:[#allocation5 + $0x3c] sm:$0xff]
    %v62 = vld [vmem:[#allocation5 + $0x44] sm:$0xf]
    %v63 = vld [vmem:[#allocation5 + $0x48] sm:$0xff]
    %v64 = vld [vmem:[#allocation5 + $0x50] sm:$0xf]
    %v65 = vld [vmem:[#allocation5 + $0x54] sm:$0xff]
    %v66 = vld [vmem:[#allocation5 + $0x5c] sm:$0xf]
    %v67 = vld [vmem:[#allocation5 + $0x60] sm:$0xff]
    %v68 = vld [vmem:[#allocation5 + $0x68] sm:$0xf]
    %v69 = vld [vmem:[#allocation5 + $0x6c] sm:$0xff]
    %v70 = vld [vmem:[#allocation5 + $0x74] sm:$0xf]
    %v71 = vld [vmem:[#allocation5 + $0x78] sm:$0xff]
    %v72 = vld [vmem:[#allocation5 + $0x80] sm:$0xf]
    %v73 = vld [vmem:[#allocation5 + $0x84] sm:$0xff]
    %v74 = vld [vmem:[#allocation5 + $0x8c] sm:$0xf]
    %v75 = vld [vmem:[#allocation5 + $0x90] sm:$0xff]
    %v76 = vld [vmem:[#allocation5 + $0x98] sm:$0xf]
    %v77 = vld [vmem:[#allocation5 + $0x9c] sm:$0xff]
    %v78 = vld [vmem:[#allocation5 + $0xa4] sm:$0xf]
    %v79 = vld [vmem:[#allocation5 + $0xa8] sm:$0xff]
    %v80 = vld [vmem:[#allocation5 + $0xb0] sm:$0xf]
    %v81 = vld [vmem:[#allocation5 + $0xb4] sm:$0xff]
    %v82 = vld [vmem:[#allocation5 + $0xbc] sm:$0xf]
    %v83 = vld [vmem:[%s2] sm:$0x7]
    %v85 = vlaneseq
    %v86 = vshrl.u32 %v85, 7
    %v87 = vsub.s32 0, %v86
    %v88 = vrot.slane %v83, %v87
    %v89 = vlaneseq
    %v90 = vshrl.u32 %v89, 7
    %v91 = vsub.s32 1, %v90
    %v92 = vrot.slane %v83, %v91
    %v93 = vlaneseq
    %v94 = vshrl.u32 %v93, 7
    %v95 = vsub.s32 2, %v94
    %v96 = vrot.slane %v83, %v95
    %v107 = vunpack.c.l.b16 %v44
    %v108 = vunpack.c.l.b16 %v45
    %v109 = vunpack.c.l.b16 %v46
    %v110 = vunpack.c.l.b16 %v47
    %v111 = vunpack.c.l.b16 %v48
    %v112 = vunpack.c.l.b16 %v49
    %v113 = vunpack.c.l.b16 %v50
    %v114 = vpack.c.b16 %v108, %v107
    %v115 = vpack.c.b16 %v110, %v109
    %v116 = vpack.c.b16 %v112, %v111
    %v117 = vpack.c.b16 %v113, %v113
    %v154 = vunpack.c.l.b16 %v51
    %v155 = vunpack.c.h.b16 %v51
    %v156 = vunpack.c.l.b16 %v52
    %v157 = vunpack.c.l.b16 %v53
    %v158 = vunpack.c.h.b16 %v53
    %v159 = vunpack.c.l.b16 %v54
    %v160 = vunpack.c.l.b16 %v55
    %v161 = vunpack.c.h.b16 %v55
    %v162 = vunpack.c.l.b16 %v56
    %v163 = vunpack.c.l.b16 %v57
    %v164 = vunpack.c.h.b16 %v57
    %v165 = vunpack.c.l.b16 %v58
    %v166 = vunpack.c.l.b16 %v59
    %v167 = vunpack.c.h.b16 %v59
    %v168 = vunpack.c.l.b16 %v60
    %v169 = vunpack.c.l.b16 %v61
    %v170 = vunpack.c.h.b16 %v61
    %v171 = vunpack.c.l.b16 %v62
    %v172 = vunpack.c.l.b16 %v63
    %v173 = vunpack.c.h.b16 %v63
    %v174 = vunpack.c.l.b16 %v64
    %v175 = vunpack.c.l.b16 %v65
    %v176 = vunpack.c.h.b16 %v65
    %v177 = vunpack.c.l.b16 %v66
    %v178 = vunpack.c.l.b16 %v67
    %v179 = vunpack.c.h.b16 %v67
    %v180 = vunpack.c.l.b16 %v68
    %v181 = vunpack.c.l.b16 %v69
    %v182 = vunpack.c.h.b16 %v69
    %v183 = vunpack.c.l.b16 %v70
    %v184 = vunpack.c.l.b16 %v71
    %v185 = vunpack.c.h.b16 %v71
    %v186 = vunpack.c.l.b16 %v72
    %v187 = vunpack.c.l.b16 %v73
    %v188 = vunpack.c.h.b16 %v73
    %v189 = vunpack.c.l.b16 %v74
    %v190 = vunpack.c.l.b16 %v75
    %v191 = vunpack.c.h.b16 %v75
    %v192 = vunpack.c.l.b16 %v76
    %v193 = vunpack.c.l.b16 %v77
    %v194 = vunpack.c.h.b16 %v77
    %v195 = vunpack.c.l.b16 %v78
    %v196 = vunpack.c.l.b16 %v79
    %v197 = vunpack.c.h.b16 %v79
    %v198 = vunpack.c.l.b16 %v80
    %v199 = vunpack.c.l.b16 %v81
    %v200 = vunpack.c.h.b16 %v81
    %v201 = vunpack.c.l.b16 %v82
    %v202 = vpack.c.b16 %v157, %v154
    %v203 = vpack.c.b16 %v158, %v155
    %v204 = vpack.c.b16 %v159, %v156
    %v205 = vpack.c.b16 %v163, %v160
    %v206 = vpack.c.b16 %v164, %v161
    %v207 = vpack.c.b16 %v165, %v162
    %v208 = vpack.c.b16 %v169, %v166
    %v209 = vpack.c.b16 %v170, %v167
    %v210 = vpack.c.b16 %v171, %v168
    %v211 = vpack.c.b16 %v175, %v172
    %v212 = vpack.c.b16 %v176, %v173
    %v213 = vpack.c.b16 %v177, %v174
    %v214 = vpack.c.b16 %v181, %v178
    %v215 = vpack.c.b16 %v182, %v179
    %v216 = vpack.c.b16 %v183, %v180
    %v217 = vpack.c.b16 %v187, %v184
    %v218 = vpack.c.b16 %v188, %v185
    %v219 = vpack.c.b16 %v189, %v186
    %v220 = vpack.c.b16 %v193, %v190
    %v221 = vpack.c.b16 %v194, %v191
    %v222 = vpack.c.b16 %v195, %v192
    %v223 = vpack.c.b16 %v199, %v196
    %v224 = vpack.c.b16 %v200, %v197
    %v225 = vpack.c.b16 %v201, %v198
    %250 = vmatprep.subr.bf16.mxu0 %v203
    %251 = vmatpush1.bf16.msra.mxu0 %v202
    %252 = vmatprep.subr.bf16.mxu0 %v206
    %253 = vmatpush1.bf16.msra.mxu0 %v205
    %254 = vmatprep.subr.bf16.mxu0 %v209
    %255 = vmatpush1.bf16.msra.mxu0 %v208
    %256 = vmatprep.subr.bf16.mxu0 %v212
    %257 = vmatpush1.bf16.msra.mxu0 %v211
    %258 = vmatprep.subr.bf16.mxu0 %v215
    %259 = vmatpush1.bf16.msra.mxu0 %v214
    %260 = vmatprep.subr.bf16.mxu0 %v218
    %261 = vmatpush1.bf16.msra.mxu0 %v217
    %262 = vmatprep.subr.bf16.mxu0 %v221
    %263 = vmatpush1.bf16.msra.mxu0 %v220
    %264 = vmatprep.subr.bf16.mxu0 %v224
    %265 = vmatpush1.bf16.msra.mxu0 %v223
    %266 = vmatprep.subr.bf16.mxu0 0
    %267 = vmatpush1.bf16.msra.mxu0 0
    %268 = vmatprep.subr.bf16.mxu0 0
    %269 = vmatpush1.bf16.msra.mxu0 0
    %270 = vmatprep.subr.bf16.mxu0 0
    %271 = vmatpush1.bf16.msra.mxu0 0
    %272 = vmatprep.subr.bf16.mxu0 0
    %273 = vmatpush1.bf16.msra.mxu0 0
    %274 = vmatprep.subr.bf16.mxu0 0
    %275 = vmatpush1.bf16.msra.mxu0 0
    %276 = vmatprep.subr.bf16.mxu0 0
    %277 = vmatpush1.bf16.msra.mxu0 0
    %278 = vmatprep.subr.bf16.mxu0 0
    %279 = vmatpush1.bf16.msra.mxu0 0
    %280 = vmatprep.subr.bf16.mxu0 0
    %281 = vmatpush1.bf16.msra.mxu0 0
    %282 = vmatprep.mubr.bf16.mxu0 0
    %283 = vmatmul.mubr.bf16.gmra.mrb[0].mxu0 %v114
    %v284 = vpop.f32.mrb[0].mxu0
    %v285 = vadd.f32 %v88, %v284
    %v286 = vpop.f32.mrb[0].mxu0
    %v287 = vadd.f32 %v92, %v286
    %v288 = vpop.f32.mrb[0].mxu0
    %v289 = vadd.f32 %v88, %v288
    %v290 = vpop.f32.mrb[0].mxu0
    %v291 = vadd.f32 %v92, %v290
    %292 = vmatprep.mubr.bf16.mxu0 0
    %293 = vmatmul.mubr.bf16.gmra.mrb[0].mxu0 %v115
    %v294 = vpop.f32.mrb[0].mxu0
    %v295 = vadd.f32 %v88, %v294
    %v296 = vpop.f32.mrb[0].mxu0
    %v297 = vadd.f32 %v92, %v296
    %v298 = vpop.f32.mrb[0].mxu0
    %v299 = vadd.f32 %v88, %v298
    %v300 = vpop.f32.mrb[0].mxu0
    %v301 = vadd.f32 %v92, %v300
    %302 = vmatprep.mubr.bf16.mxu0 0
    %303 = vmatmul.mubr.bf16.gmra.mrb[0].mxu0 %v116
    %v304 = vpop.f32.mrb[0].mxu0
    %v305 = vadd.f32 %v88, %v304
    %v306 = vpop.f32.mrb[0].mxu0
    %v307 = vadd.f32 %v92, %v306
    %v308 = vpop.f32.mrb[0].mxu0
    %v309 = vadd.f32 %v88, %v308
    %v310 = vpop.f32.mrb[0].mxu0
    %v311 = vadd.f32 %v92, %v310
    %312 = vmatprep.mubr.bf16.mxu0 0
    %313 = vmatmul.mubr.bf16.gmra.mrb[0].mxu0 %v117
    %v314 = vpop.f32.mrb[0].mxu0
    %v315 = vadd.f32 %v88, %v314
    %v316 = vpop.f32.mrb[0].mxu0
    %v317 = vadd.f32 %v92, %v316
    %v318 = vpop.f32.mrb[0].mxu0
    %v319 = vpop.f32.mrb[0].mxu0
    %320 = vdwg.mxu0
    %321 = vmatprep.subr.bf16.mxu0 0
    %322 = vmatpush1.bf16.msra.mxu0 %v204
    %323 = vmatprep.subr.bf16.mxu0 0
    %324 = vmatpush1.bf16.msra.mxu0 %v207
    %325 = vmatprep.subr.bf16.mxu0 0
    %326 = vmatpush1.bf16.msra.mxu0 %v210
    %327 = vmatprep.subr.bf16.mxu0 0
    %328 = vmatpush1.bf16.msra.mxu0 %v213
    %329 = vmatprep.subr.bf16.mxu0 0
    %330 = vmatpush1.bf16.msra.mxu0 %v216
    %331 = vmatprep.subr.bf16.mxu0 0
    %332 = vmatpush1.bf16.msra.mxu0 %v219
    %333 = vmatprep.subr.bf16.mxu0 0
    %334 = vmatpush1.bf16.msra.mxu0 %v222
    %335 = vmatprep.subr.bf16.mxu0 0
    %336 = vmatpush1.bf16.msra.mxu0 %v225
    %337 = vmatprep.subr.bf16.mxu0 0
    %338 = vmatpush1.bf16.msra.mxu0 0
    %339 = vmatprep.subr.bf16.mxu0 0
    %340 = vmatpush1.bf16.msra.mxu0 0
    %341 = vmatprep.subr.bf16.mxu0 0
    %342 = vmatpush1.bf16.msra.mxu0 0
    %343 = vmatprep.subr.bf16.mxu0 0
    %344 = vmatpush1.bf16.msra.mxu0 0
    %345 = vmatprep.subr.bf16.mxu0 0
    %346 = vmatpush1.bf16.msra.mxu0 0
    %347 = vmatprep.subr.bf16.mxu0 0
    %348 = vmatpush1.bf16.msra.mxu0 0
    %349 = vmatprep.subr.bf16.mxu0 0
    %350 = vmatpush1.bf16.msra.mxu0 0
    %351 = vmatprep.subr.bf16.mxu0 0
    %352 = vmatpush1.bf16.msra.mxu0 0
    %353 = vmatprep.mubr.bf16.mxu0 0
    %354 = vmatmul.mubr.bf16.gmra.mrb[0].mxu0 %v114
    %v355 = vpop.f32.mrb[0].mxu0
    %v356 = vadd.f32 %v96, %v355
    %v357 = vpop.f32.mrb[0].mxu0
    %v358 = vpop.f32.mrb[0].mxu0
    %v359 = vadd.f32 %v96, %v358
    %v360 = vpop.f32.mrb[0].mxu0
    %361 = vmatprep.mubr.bf16.mxu0 0
    %362 = vmatmul.mubr.bf16.gmra.mrb[0].mxu0 %v115
    %v363 = vpop.f32.mrb[0].mxu0
    %v364 = vadd.f32 %v96, %v363
    %v365 = vpop.f32.mrb[0].mxu0
    %v366 = vpop.f32.mrb[0].mxu0
    %v367 = vadd.f32 %v96, %v366
    %v368 = vpop.f32.mrb[0].mxu0
    %369 = vmatprep.mubr.bf16.mxu0 0
    %370 = vmatmul.mubr.bf16.gmra.mrb[0].mxu0 %v116
    %v371 = vpop.f32.mrb[0].mxu0
    %v372 = vadd.f32 %v96, %v371
    %v373 = vpop.f32.mrb[0].mxu0
    %v374 = vpop.f32.mrb[0].mxu0
    %v375 = vadd.f32 %v96, %v374
    %v376 = vpop.f32.mrb[0].mxu0
    %377 = vmatprep.mubr.bf16.mxu0 0
    %378 = vmatmul.mubr.bf16.gmra.mrb[0].mxu0 %v117
    %v379 = vpop.f32.mrb[0].mxu0
    %v380 = vadd.f32 %v96, %v379
    %v381 = vpop.f32.mrb[0].mxu0
    %v382 = vpop.f32.mrb[0].mxu0
    %v383 = vpop.f32.mrb[0].mxu0
    %384 = vdwg.mxu0
    %v385 = vpack.c.bf16 %v289, %v285
    %v386 = vpack.c.bf16 %v291, %v287
    %v387 = vpack.c.bf16 %v359, %v356
    %v388 = vpack.c.bf16 %v299, %v295
    %v389 = vpack.c.bf16 %v301, %v297
    %v390 = vpack.c.bf16 %v367, %v364
    %v391 = vpack.c.bf16 %v309, %v305
    %v392 = vpack.c.bf16 %v311, %v307
    %v393 = vpack.c.bf16 %v375, %v372
    %v394 = vpack.c.bf16 %v315, %v315
    %v395 = vpack.c.bf16 %v317, %v317
    %v396 = vpack.c.bf16 %v380, %v380
    %v409 = vunpack.c.l.b16 %v385
    %v410 = vunpack.c.l.b16 %v386
    %v411 = vunpack.c.l.b16 %v387
    %v412 = vunpack.c.h.b16 %v385
    %v413 = vunpack.c.h.b16 %v386
    %v414 = vunpack.c.h.b16 %v387
    %v415 = vunpack.c.l.b16 %v388
    %v416 = vunpack.c.l.b16 %v389
    %v417 = vunpack.c.l.b16 %v390
    %v418 = vunpack.c.h.b16 %v388
    %v419 = vunpack.c.h.b16 %v389
    %v420 = vunpack.c.h.b16 %v390
    %v421 = vunpack.c.l.b16 %v391
    %v422 = vunpack.c.l.b16 %v392
    %v423 = vunpack.c.l.b16 %v393
    %v424 = vunpack.c.h.b16 %v391
    %v425 = vunpack.c.h.b16 %v392
    %v426 = vunpack.c.h.b16 %v393
    %v427 = vunpack.c.l.b16 %v394
    %v428 = vunpack.c.l.b16 %v395
    %v429 = vunpack.c.l.b16 %v396
    %v430 = vpack.c.b16 %v410, %v409
    %v431 = vpack.c.b16 %v411, %v411
    %v432 = vpack.c.b16 %v413, %v412
    %v433 = vpack.c.b16 %v414, %v414
    %v434 = vpack.c.b16 %v416, %v415
    %v435 = vpack.c.b16 %v417, %v417
    %v436 = vpack.c.b16 %v419, %v418
    %v437 = vpack.c.b16 %v420, %v420
    %v438 = vpack.c.b16 %v422, %v421
    %v439 = vpack.c.b16 %v423, %v423
    %v440 = vpack.c.b16 %v425, %v424
    %v441 = vpack.c.b16 %v426, %v426
    %v442 = vpack.c.b16 %v428, %v427
    %v443 = vpack.c.b16 %v429, %v429
    %458 = vst [vmem:[#allocation7] sm:$0xff] %v430
    %459 = vst [vmem:[#allocation7 + $0x8] sm:$0xf] %v431
    %460 = vst [vmem:[#allocation7 + $0xc] sm:$0xff] %v432
    %461 = vst [vmem:[#allocation7 + $0x14] sm:$0xf] %v433
    %462 = vst [vmem:[#allocation7 + $0x18] sm:$0xff] %v434
    %463 = vst [vmem:[#allocation7 + $0x20] sm:$0xf] %v435
    %464 = vst [vmem:[#allocation7 + $0x24] sm:$0xff] %v436
    %465 = vst [vmem:[#allocation7 + $0x2c] sm:$0xf] %v437
    %466 = vst [vmem:[#allocation7 + $0x30] sm:$0xff] %v438
    %467 = vst [vmem:[#allocation7 + $0x38] sm:$0xf] %v439
    %468 = vst [vmem:[#allocation7 + $0x3c] sm:$0xff] %v440
    %469 = vst [vmem:[#allocation7 + $0x44] sm:$0xf] %v441
    %470 = vst [vmem:[#allocation7 + $0x48] sm:$0xff] %v442
    %471 = vst [vmem:[#allocation7 + $0x50] sm:$0xf] %v443
    // Predicated region
    $region22: #{tpu_custom_call.1} parent=1 // pred_check
      _
    $region23: #{tpu_custom_call.1} parent=1 // pred_check_branch
      %473 = sbr.rel (0) target = $region25
    $region24: #{tpu_custom_call.1} parent=1 // pred_region
      %s475 = ssub.s32 1344, 1344
      %476 = vsyncadd [#allocation4], %s475
      %s477 = sshll.u32 [#allocation7], 4
      %s478 = int_to_ptr.vmem [resolvable:$true] %s477
      %483 = dma.vmem_to_hbm [thread:$0]  %s478, 1344, %s3, [#allocation4], 192, 192, 12
    $region25: #{tpu_custom_call.1} parent=1 // pred_fallthru
      _
    // Predicated region
    $region26: #{tpu_custom_call.1} parent=1 // pred_check
      _
    $region27: #{tpu_custom_call.1} parent=1 // pred_check_branch
      %485 = sbr.rel (0) target = $region29
    $region28: #{tpu_custom_call.1} parent=1 // pred_region
      %486 = dma.done [#allocation4], 1344
    $region29: #{tpu_custom_call.1} parent=1 // pred_fallthru
      _
    %487 = vsyncpa [#allocation3], 1
    %488 = vsyncpa [#allocation6], 1
    %489 = vsyncpa [#allocation4], 1

</llo_original>
